<compile_context>
chip_gen: v5e
topology: v5e:2x2
jax: 0.10.0
libtpu: 0.0.40
codegen_flags: <defaults>
</compile_context>

<pallas_src>
import jax
import jax.numpy as jnp
from jax.experimental import pallas as pl
from jax.experimental.pallas import tpu as pltpu


def _round_up(n, m):
    return (n + m - 1) // m * m


def _pad_to(a, shape):
    pads = [(0, s - d) for d, s in zip(a.shape, shape)]
    return jnp.pad(a, pads)


def _choose_tile_b(B, tile_b):
    # Force a multiple of 128 within [128, 2048] (2048 cap keeps v7x's 64 MiB VMEM happy).
    tile_b = min(max(_round_up(tile_b, 128), 128), 2048)
    # Never wider than the lane-rounded batch.
    tile_b = min(tile_b, _round_up(B, 128))
    # Mid-size batches: guarantee >= 2 grid steps so dimension_semantics=("parallel",)
    # can shard work across both v7x TensorCores (cost: one extra ~0.35 us step).
    if B >= 256 and pl.cdiv(B, tile_b) < 2:
        tile_b = _round_up(B, 256) // 2  # multiple of 128 by construction
    return tile_b


def _mlp_kernel(x_ref, w1_ref, b1_ref, w2_ref, b2_ref, w3_ref, b3_ref, o_ref):
    # x tile arrives in its natural (tile_b, in_p) f32 layout; cheap VPU cast to bf16.
    xb = x_ref[...].astype(w1_ref.dtype)

    # fc1 (transposed problem): contract dim 1 of w1 (h1p, in_p) with dim 1 of x
    # (tile_b, in_p) -> (h1p, tile_b).  bf16 MXU inputs, f32 accumulation.
    h1 = jax.lax.dot_general(
        w1_ref[...], xb,
        dimension_numbers=(((1,), (1,)), ((), ())),
        preferred_element_type=jnp.float32)
    h1 = jnp.maximum(h1 + b1_ref[...], 0.0)            # (h1p,1) bias lane-broadcast, f32 ReLU

    # fc2: (h2p, h1p) @ (h1p, tile_b) -> (h2p, tile_b)
    h2 = jnp.dot(w2_ref[...], h1.astype(w2_ref.dtype),
                 preferred_element_type=jnp.float32)
    h2 = jnp.maximum(h2 + b2_ref[...], 0.0)

    # fc3 (out_features = 1): VPU multiply + sublane (XLU) reduce instead of an N=1 MXU
    # matmul.  Produces a lane-dense (1, tile_b) row; scalar bias comes from SMEM.
    out_row = jnp.sum(h2 * w3_ref[...], axis=0, keepdims=True) + b3_ref[0, 0]
    o_ref[...] = out_row.astype(o_ref.dtype)


def domain_classifier_digits(x, params, *, tile_b=1024):
    """Forward pass of DomainClassifierDigits as a single batch-tiled Pallas kernel.

    x:      (B, input_size) float32
    params: dict with w1 (in,500), b1 (500,), w2 (500,100), b2 (100,), w3 (100,1), b3 (1,)
            (weights stored (in, out), i.e. PyTorch Linear weight transposed).
    returns: (B, 1) float32
    """
    B, in_size = x.shape
    w1, b1 = params["w1"], params["b1"]
    w2, b2 = params["w2"], params["b2"]
    w3, b3 = params["w3"], params["b3"]
    h1_dim, h2_dim = w1.shape[1], w2.shape[1]

    # Lane/sublane friendly padded sizes.
    in_p = _round_up(in_size, 128)      # 128 -> 128
    h1p = _round_up(h1_dim, 128)        # 500 -> 512
    h2p = _round_up(h2_dim, 128)        # 100 -> 128

    tile_b = _choose_tile_b(B, tile_b)
    grid_b = pl.cdiv(B, tile_b)
    b_out = grid_b * tile_b

    # x stays in natural (B, in) f32 layout — no transpose / bf16 copy pre-pass.
    #  * Feature dim is zero-padded to a lane multiple only if needed (zero columns meet
    #    zero weight columns, so numerics are unchanged).
    #  * Batch is zero-padded only for tiny batches (B < one tile) so the single block never
    #    exceeds the array.  For B > tile_b the ragged last block is handled by Pallas; any
    #    junk rows in it stay lane-isolated and only touch output lanes sliced off below.
    row_pad = tile_b - B if B < tile_b else 0
    col_pad = in_p - in_size
    if row_pad or col_pad:
        x = jnp.pad(x, ((0, row_pad), (0, col_pad)))

    bf16 = jnp.bfloat16
    # Weights in (out, in) layout (PyTorch-style), zero-padded, bf16 for the MXU.
    w1t = _pad_to(w1.T, (h1p, in_p)).astype(bf16)                  # (512, in_p)
    w2t = _pad_to(w2.T, (h2p, h1p)).astype(bf16)                   # (128, 512)
    w3c = _pad_to(w3, (h2p, 1)).astype(jnp.float32)                # (128, 1) column (VPU path)
    b1c = _pad_to(b1.reshape(-1, 1), (h1p, 1)).astype(jnp.float32)
    b2c = _pad_to(b2.reshape(-1, 1), (h2p, 1)).astype(jnp.float32)
    b3s = b3.reshape(1, 1).astype(jnp.float32)                     # scalar -> SMEM

    resident = lambda shape: pl.BlockSpec(shape, lambda i: (0, 0))  # same block every step

    out = pl.pallas_call(
        _mlp_kernel,
        out_shape=jax.ShapeDtypeStruct((1, b_out), jnp.float32),
        grid=(grid_b,),
        in_specs=[
            pl.BlockSpec((tile_b, in_p), lambda i: (i, 0)),        # natural-layout x tile
            resident(w1t.shape),
            resident(b1c.shape),
            resident(w2t.shape),
            resident(b2c.shape),
            resident(w3c.shape),
            pl.BlockSpec(memory_space=pltpu.MemorySpace.SMEM),     # fc3 scalar bias
        ],
        out_specs=pl.BlockSpec((1, tile_b), lambda i: (0, i)),     # lane-dense output row
        compiler_params=pltpu.CompilerParams(
            dimension_semantics=("parallel",),                     # megacore-shard batch on v7x
        ),
    )(x, w1t, b1c, w2t, b2c, w3c, b3s)

    return out[0, :B].reshape(B, 1)


def _reference(x, params):
    h1 = jnp.maximum(x @ params["w1"] + params["b1"], 0.0)
    h2 = jnp.maximum(h1 @ params["w2"] + params["b2"], 0.0)
    return h2 @ params["w3"] + params["b3"]


def _reference_bf16(x, params):
    """Precision-matched reference (bf16 MXU inputs, f32 accumulate, f32 last layer)."""
    bf16 = jnp.bfloat16
    h1 = jnp.maximum(
        jnp.dot(x.astype(bf16), params["w1"].astype(bf16),
                preferred_element_type=jnp.float32) + params["b1"], 0.0)
    h2 = jnp.maximum(
        jnp.dot(h1.astype(bf16), params["w2"].astype(bf16),
                preferred_element_type=jnp.float32) + params["b2"], 0.0)
    return jnp.dot(h2, params["w3"], preferred_element_type=jnp.float32) + params["b3"]


def init_params(key, input_size=128):
    """Deterministic init matching the module's shapes (fc1: in->500, fc2: 500->100, fc3: 100->1)."""
    k1, k2, k3, k4, k5, k6 = jax.random.split(key, 6)

    def linear(kw, kb, fan_in, fan_out):
        # PyTorch-style uniform(-1/sqrt(fan_in), 1/sqrt(fan_in)); weight stored as (in, out).
        bound = 1.0 / jnp.sqrt(jnp.float32(fan_in))
        w = jax.random.uniform(kw, (fan_in, fan_out), jnp.float32, -bound, bound)
        b = jax.random.uniform(kb, (fan_out,), jnp.float32, -bound, bound)
        return w, b

    w1, b1 = linear(k1, k2, input_size, 500)
    w2, b2 = linear(k3, k4, 500, 100)
    w3, b3 = linear(k5, k6, 100, 1)
    return {"w1": w1, "b1": b1, "w2": w2, "b2": b2, "w3": w3, "b3": b3}


if __name__ == "__main__":
    key = jax.random.PRNGKey(0)
    kx, kx2, kp = jax.random.split(key, 3)

    input_size = 128
    params = init_params(kp, input_size=input_size)
    fwd = jax.jit(domain_classifier_digits)

    # Small batch: single grid step, batch padded up to one 128-wide tile.
    x_small = jax.random.normal(kx, (8, input_size), jnp.float32)
    out_small = jax.block_until_ready(fwd(x_small, params))
    assert out_small.shape == (8, 1), out_small.shape
    assert jnp.allclose(out_small, _reference_bf16(x_small, params), atol=5e-3, rtol=5e-3), \
        "small batch: mismatch vs bf16-matched reference"
    assert jnp.allclose(out_small, _reference(x_small, params), atol=5e-2, rtol=5e-2), \
        "small batch: mismatch vs f32 reference"

    # Mid-size batch: exercises the >=2-step grid (two TensorCores on v7x) and the ragged
    # final batch block handled by Pallas.
    x_mid = jax.random.normal(kx2, (300, input_size), jnp.float32)
    out_mid = jax.block_until_ready(fwd(x_mid, params))
    assert out_mid.shape == (300, 1), out_mid.shape
    assert jnp.allclose(out_mid, _reference_bf16(x_mid, params), atol=5e-3, rtol=5e-3), \
        "mid batch: mismatch vs bf16-matched reference"
    assert jnp.allclose(out_mid, _reference(x_mid, params), atol=5e-2, rtol=5e-2), \
        "mid batch: mismatch vs f32 reference"

    print("KERNEL_OK")
</pallas_src>

<mosaic_0001>
module attributes {stable_mosaic.version = 11 : i64} {
  func.func @_mlp_kernel(%arg0: i32, %arg1: memref<128x128xf32, #tpu.memory_space<vmem>>, %arg2: memref<512x128xbf16, #tpu.memory_space<vmem>>, %arg3: memref<512x1xf32, #tpu.memory_space<vmem>>, %arg4: memref<128x512xbf16, #tpu.memory_space<vmem>>, %arg5: memref<128x1xf32, #tpu.memory_space<vmem>>, %arg6: memref<128x1xf32, #tpu.memory_space<vmem>>, %arg7: memref<1x1xf32, #tpu.memory_space<smem>>, %arg8: memref<1x128xf32, #tpu.memory_space<vmem>>) attributes {dimension_semantics = [#tpu.dimension_semantics<parallel>], iteration_bounds = array<i64: 1>, scalar_prefetch = 0 : i64, scratch_operands = 0 : i64, tpu.core_type = #tpu.core_type<tc>, window_params = [{transform_indices = @transform_0, window_bounds = array<i64: 128, 128>}, {pipeline_mode = #tpu.pipeline_mode<synchronous>, transform_indices = @transform_1, window_bounds = array<i64: 512, 128>}, {pipeline_mode = #tpu.pipeline_mode<synchronous>, transform_indices = @transform_2, window_bounds = array<i64: 512, 1>}, {pipeline_mode = #tpu.pipeline_mode<synchronous>, transform_indices = @transform_3, window_bounds = array<i64: 128, 512>}, {pipeline_mode = #tpu.pipeline_mode<synchronous>, transform_indices = @transform_4, window_bounds = array<i64: 128, 1>}, {pipeline_mode = #tpu.pipeline_mode<synchronous>, transform_indices = @transform_5, window_bounds = array<i64: 128, 1>}, {transform_indices = @transform_6, window_bounds = array<i64: 1, 1>}, {transform_indices = @transform_7, window_bounds = array<i64: 1, 128>}]} {
    %c0 = arith.constant 0 : index
    %c0_0 = arith.constant 0 : index
    %0 = vector.load %arg1[%c0, %c0_0] : memref<128x128xf32, #tpu.memory_space<vmem>>, vector<128x128xf32>
    %1 = arith.truncf %0 : vector<128x128xf32> to vector<128x128xbf16>
    %c0_1 = arith.constant 0 : index
    %c0_2 = arith.constant 0 : index
    %2 = vector.load %arg2[%c0_1, %c0_2] : memref<512x128xbf16, #tpu.memory_space<vmem>>, vector<512x128xbf16>
    %cst = arith.constant dense<0.000000e+00> : vector<512x128xf32>
    %3 = tpu.matmul %2, %1, %cst {dimension_numbers = #tpu.dot_dimension_numbers<[1], [1], [0], [0], [0, 0, 1, 0], [], []>} : vector<512x128xbf16>, vector<128x128xbf16>, vector<512x128xf32> -> vector<512x128xf32>
    %c0_3 = arith.constant 0 : index
    %c0_4 = arith.constant 0 : index
    %4 = vector.load %arg3[%c0_3, %c0_4] : memref<512x1xf32, #tpu.memory_space<vmem>>, vector<512x1xf32>
    %5 = vector.broadcast %4 : vector<512x1xf32> to vector<512x128xf32>
    %6 = arith.addf %3, %5 : vector<512x128xf32>
    %cst_5 = arith.constant 0.000000e+00 : f32
    %7 = vector.broadcast %cst_5 : f32 to vector<512x128xf32>
    %8 = arith.maximumf %6, %7 : vector<512x128xf32>
    %c0_6 = arith.constant 0 : index
    %c0_7 = arith.constant 0 : index
    %9 = vector.load %arg4[%c0_6, %c0_7] : memref<128x512xbf16, #tpu.memory_space<vmem>>, vector<128x512xbf16>
    %10 = arith.truncf %8 : vector<512x128xf32> to vector<512x128xbf16>
    %cst_8 = arith.constant dense<0.000000e+00> : vector<128x128xf32>
    %11 = tpu.matmul %9, %10, %cst_8 {dimension_numbers = #tpu.dot_dimension_numbers<[1], [0], [0], [1], [0, 0, 1, 1], [], []>} : vector<128x512xbf16>, vector<512x128xbf16>, vector<128x128xf32> -> vector<128x128xf32>
    %c0_9 = arith.constant 0 : index
    %c0_10 = arith.constant 0 : index
    %12 = vector.load %arg5[%c0_9, %c0_10] : memref<128x1xf32, #tpu.memory_space<vmem>>, vector<128x1xf32>
    %13 = vector.broadcast %12 : vector<128x1xf32> to vector<128x128xf32>
    %14 = arith.addf %11, %13 : vector<128x128xf32>
    %cst_11 = arith.constant 0.000000e+00 : f32
    %15 = vector.broadcast %cst_11 : f32 to vector<128x128xf32>
    %16 = arith.maximumf %14, %15 : vector<128x128xf32>
    %c0_12 = arith.constant 0 : index
    %c0_13 = arith.constant 0 : index
    %17 = vector.load %arg6[%c0_12, %c0_13] : memref<128x1xf32, #tpu.memory_space<vmem>>, vector<128x1xf32>
    %18 = vector.broadcast %17 : vector<128x1xf32> to vector<128x128xf32>
    %19 = arith.mulf %16, %18 : vector<128x128xf32>
    %cst_14 = arith.constant dense<0.000000e+00> : vector<128xf32>
    %20 = vector.multi_reduction <add>, %19, %cst_14 [0] : vector<128x128xf32> to vector<128xf32>
    %21 = vector.shape_cast %20 : vector<128xf32> to vector<1x128xf32>
    %c0_15 = arith.constant 0 : index
    %c0_16 = arith.constant 0 : index
    %22 = memref.load %arg7[%c0_15, %c0_16] : memref<1x1xf32, #tpu.memory_space<smem>>
    %23 = vector.broadcast %22 : f32 to vector<1x128xf32>
    %24 = arith.addf %21, %23 : vector<1x128xf32>
    %c0_17 = arith.constant 0 : index
    %c0_18 = arith.constant 0 : index
    %25 = vector.load %arg8[%c0_17, %c0_18] : memref<1x128xf32, #tpu.memory_space<vmem>>, vector<1x128xf32>
    tpu.vector_store %arg8[%c0_17, %c0_18], %24 {strides = array<i32>} : memref<1x128xf32, #tpu.memory_space<vmem>>, vector<1x128xf32>,
    return
  }
  func.func @transform_0(%arg0: i32) -> (i32, i32) {
    %c0_i32 = arith.constant 0 : i32
    %c0_i32_0 = arith.constant 0 : i32
    return %arg0, %c0_i32 : i32, i32
  }
  func.func @transform_1(%arg0: i32) -> (i32, i32) {
    %c0_i32 = arith.constant 0 : i32
    %c0_i32_0 = arith.constant 0 : i32
    %c0_i32_1 = arith.constant 0 : i32
    return %c0_i32, %c0_i32_0 : i32, i32
  }
  func.func @transform_2(%arg0: i32) -> (i32, i32) {
    %c0_i32 = arith.constant 0 : i32
    %c0_i32_0 = arith.constant 0 : i32
    %c0_i32_1 = arith.constant 0 : i32
    return %c0_i32, %c0_i32_0 : i32, i32
  }
  func.func @transform_3(%arg0: i32) -> (i32, i32) {
    %c0_i32 = arith.constant 0 : i32
    %c0_i32_0 = arith.constant 0 : i32
    %c0_i32_1 = arith.constant 0 : i32
    return %c0_i32, %c0_i32_0 : i32, i32
  }
  func.func @transform_4(%arg0: i32) -> (i32, i32) {
    %c0_i32 = arith.constant 0 : i32
    %c0_i32_0 = arith.constant 0 : i32
    %c0_i32_1 = arith.constant 0 : i32
    return %c0_i32, %c0_i32_0 : i32, i32
  }
  func.func @transform_5(%arg0: i32) -> (i32, i32) {
    %c0_i32 = arith.constant 0 : i32
    %c0_i32_0 = arith.constant 0 : i32
    %c0_i32_1 = arith.constant 0 : i32
    return %c0_i32, %c0_i32_0 : i32, i32
  }
  func.func @transform_6(%arg0: i32) -> (i32, i32) {
    %c0_i32 = arith.constant 0 : i32
    %c0_i32_0 = arith.constant 0 : i32
    %c0_i32_1 = arith.constant 0 : i32
    return %c0_i32, %c0_i32_0 : i32, i32
  }
  func.func @transform_7(%arg0: i32) -> (i32, i32) {
    %c0_i32 = arith.constant 0 : i32
    %c0_i32_0 = arith.constant 0 : i32
    return %c0_i32, %arg0 : i32, i32
  }
}

</mosaic_0001>

<llo_original>
// kernel: domain_classifier_digits.1
$region0: #{domain_classifier_digits.1}
  #allocation0 [shape = 'u32[]', space=smem, size = 0x4, offset = 0x4, fixed_abs, tag = 'smem constant byte address 0x4 - core index']
  #allocation1 [shape = 'u32[72,128]{1,0:T(1,128)}', space=vmem, size = 0x9000, scoped, tag = 'internal scratch']
  #allocation2 [shape = 'f32[1,1]{1,0:T(1,128)S(6)}', space=smem, size = 0x200, scoped, tag = 'scoped memory for domain_classifier_digits.1']
  %s0 = inlined_call_operand.vmem [shape: f32[128,128], index: 0, kind: input, shape index: {}]
  %s1 = inlined_call_operand.vmem [shape: bf16[512,128], index: 1, kind: input, shape index: {}]
  %s2 = inlined_call_operand.vmem [shape: f32[512,1], index: 2, kind: input, shape index: {}]
  %s3 = inlined_call_operand.vmem [shape: bf16[128,512], index: 3, kind: input, shape index: {}]
  %s4 = inlined_call_operand.vmem [shape: f32[128,1], index: 4, kind: input, shape index: {}]
  %s5 = inlined_call_operand.vmem [shape: f32[128,1], index: 5, kind: input, shape index: {}]
  %s6 = inlined_call_operand.<no memory space> [shape: f32[1,1], index: 6, kind: input, shape index: {}]
  %s7 = inlined_call_operand.vmem [shape: f32[1,128], index: 7, kind: output, shape index: {}]
  %s8 = sld [smem:[#allocation0]]
  $region38: #{domain_classifier_digits.1} parent=0
    _
  %s10 = ssub.s32 1, %s8
  %s11 = scalar_select 0, %s10, %s8
  %12 = sst [smem:[#allocation2]] %s6
  // Predicated region
  $region2: #{domain_classifier_digits.1} parent=0 // pred_check
    _
  $region3: #{domain_classifier_digits.1} parent=0 // pred_check_branch
    %14 = sbr.rel (0) target = $region5
  $region4: #{domain_classifier_digits.1} parent=0 // pred_region
    _
  $region5: #{domain_classifier_digits.1} parent=0 // pred_fallthru
    _
  // Predicated region
  $region6: #{domain_classifier_digits.1} parent=0 // pred_check
    _
  $region7: #{domain_classifier_digits.1} parent=0 // pred_check_branch
    %16 = sbr.rel (0) target = $region9
  $region8: #{domain_classifier_digits.1} parent=0 // pred_region
    _
  $region9: #{domain_classifier_digits.1} parent=0 // pred_fallthru
    _
  // Predicated region
  $region10: #{domain_classifier_digits.1} parent=0 // pred_check
    _
  $region11: #{domain_classifier_digits.1} parent=0 // pred_check_branch
    %18 = sbr.rel (0) target = $region13
  $region12: #{domain_classifier_digits.1} parent=0 // pred_region
    _
  $region13: #{domain_classifier_digits.1} parent=0 // pred_fallthru
    _
  // Predicated region
  $region14: #{domain_classifier_digits.1} parent=0 // pred_check
    _
  $region15: #{domain_classifier_digits.1} parent=0 // pred_check_branch
    %20 = sbr.rel (0) target = $region17
  $region16: #{domain_classifier_digits.1} parent=0 // pred_region
    _
  $region17: #{domain_classifier_digits.1} parent=0 // pred_fallthru
    _
  // Predicated region
  $region18: #{domain_classifier_digits.1} parent=0 // pred_check
    _
  $region19: #{domain_classifier_digits.1} parent=0 // pred_check_branch
    %22 = sbr.rel (0) target = $region21
  $region20: #{domain_classifier_digits.1} parent=0 // pred_region
    _
  $region21: #{domain_classifier_digits.1} parent=0 // pred_fallthru
    _
  // Predicated region
  $region22: #{domain_classifier_digits.1} parent=0 // pred_check
    _
  $region23: #{domain_classifier_digits.1} parent=0 // pred_check_branch
    %24 = sbr.rel (0) target = $region25
  $region24: #{domain_classifier_digits.1} parent=0 // pred_region
    _
  $region25: #{domain_classifier_digits.1} parent=0 // pred_fallthru
    _
  // Predicated region
  $region26: #{domain_classifier_digits.1} parent=0 // pred_check
    _
  $region27: #{domain_classifier_digits.1} parent=0 // pred_check_branch
    %26 = sbr.rel (0) target = $region29
  $region28: #{domain_classifier_digits.1} parent=0 // pred_region
    _
  $region29: #{domain_classifier_digits.1} parent=0 // pred_fallthru
    _
  %v27 = vld [vmem:[%s0] sm:$0xff]
  %v28 = vld [vmem:[%s0 + $0x8] sm:$0xff]
  %v29 = vld [vmem:[%s0 + $0x10] sm:$0xff]
  %v30 = vld [vmem:[%s0 + $0x18] sm:$0xff]
  %v31 = vld [vmem:[%s0 + $0x20] sm:$0xff]
  %v32 = vld [vmem:[%s0 + $0x28] sm:$0xff]
  %v33 = vld [vmem:[%s0 + $0x30] sm:$0xff]
  %v34 = vld [vmem:[%s0 + $0x38] sm:$0xff]
  %v35 = vld [vmem:[%s0 + $0x40] sm:$0xff]
  %v36 = vld [vmem:[%s0 + $0x48] sm:$0xff]
  %v37 = vld [vmem:[%s0 + $0x50] sm:$0xff]
  %v38 = vld [vmem:[%s0 + $0x58] sm:$0xff]
  %v39 = vld [vmem:[%s0 + $0x60] sm:$0xff]
  %v40 = vld [vmem:[%s0 + $0x68] sm:$0xff]
  %v41 = vld [vmem:[%s0 + $0x70] sm:$0xff]
  %v42 = vld [vmem:[%s0 + $0x78] sm:$0xff]
  %v43 = vpack.c.bf16 %v28, %v27
  %v44 = vpack.c.bf16 %v30, %v29
  %v45 = vpack.c.bf16 %v32, %v31
  %v46 = vpack.c.bf16 %v34, %v33
  %v47 = vpack.c.bf16 %v36, %v35
  %v48 = vpack.c.bf16 %v38, %v37
  %v49 = vpack.c.bf16 %v40, %v39
  %v50 = vpack.c.bf16 %v42, %v41
  %v51 = vld [vmem:[%s1] sm:$0xf]
  %v52 = vld [vmem:[%s1 + $0x4] sm:$0xf]
  %v53 = vld [vmem:[%s1 + $0x8] sm:$0xf]
  %v54 = vld [vmem:[%s1 + $0xc] sm:$0xf]
  %v55 = vld [vmem:[%s1 + $0x10] sm:$0xf]
  %v56 = vld [vmem:[%s1 + $0x14] sm:$0xf]
  %v57 = vld [vmem:[%s1 + $0x18] sm:$0xf]
  %v58 = vld [vmem:[%s1 + $0x1c] sm:$0xf]
  %v59 = vld [vmem:[%s1 + $0x20] sm:$0xf]
  %v60 = vld [vmem:[%s1 + $0x24] sm:$0xf]
  %v61 = vld [vmem:[%s1 + $0x28] sm:$0xf]
  %v62 = vld [vmem:[%s1 + $0x2c] sm:$0xf]
  %v63 = vld [vmem:[%s1 + $0x30] sm:$0xf]
  %v64 = vld [vmem:[%s1 + $0x34] sm:$0xf]
  %v65 = vld [vmem:[%s1 + $0x38] sm:$0xf]
  %v66 = vld [vmem:[%s1 + $0x3c] sm:$0xf]
  %v67 = vld [vmem:[%s1 + $0x40] sm:$0xf]
  %v68 = vld [vmem:[%s1 + $0x44] sm:$0xf]
  %v69 = vld [vmem:[%s1 + $0x48] sm:$0xf]
  %v70 = vld [vmem:[%s1 + $0x4c] sm:$0xf]
  %v71 = vld [vmem:[%s1 + $0x50] sm:$0xf]
  %v72 = vld [vmem:[%s1 + $0x54] sm:$0xf]
  %v73 = vld [vmem:[%s1 + $0x58] sm:$0xf]
  %v74 = vld [vmem:[%s1 + $0x5c] sm:$0xf]
  %v75 = vld [vmem:[%s1 + $0x60] sm:$0xf]
  %v76 = vld [vmem:[%s1 + $0x64] sm:$0xf]
  %v77 = vld [vmem:[%s1 + $0x68] sm:$0xf]
  %v78 = vld [vmem:[%s1 + $0x6c] sm:$0xf]
  %v79 = vld [vmem:[%s1 + $0x70] sm:$0xf]
  %v80 = vld [vmem:[%s1 + $0x74] sm:$0xf]
  %v81 = vld [vmem:[%s1 + $0x78] sm:$0xf]
  %v82 = vld [vmem:[%s1 + $0x7c] sm:$0xf]
  %v83 = vld [vmem:[%s1 + $0x80] sm:$0xf]
  %v84 = vld [vmem:[%s1 + $0x84] sm:$0xf]
  %v85 = vld [vmem:[%s1 + $0x88] sm:$0xf]
  %v86 = vld [vmem:[%s1 + $0x8c] sm:$0xf]
  %v87 = vld [vmem:[%s1 + $0x90] sm:$0xf]
  %v88 = vld [vmem:[%s1 + $0x94] sm:$0xf]
  %v89 = vld [vmem:[%s1 + $0x98] sm:$0xf]
  %v90 = vld [vmem:[%s1 + $0x9c] sm:$0xf]
  %v91 = vld [vmem:[%s1 + $0xa0] sm:$0xf]
  %v92 = vld [vmem:[%s1 + $0xa4] sm:$0xf]
  %v93 = vld [vmem:[%s1 + $0xa8] sm:$0xf]
  %v94 = vld [vmem:[%s1 + $0xac] sm:$0xf]
  %v95 = vld [vmem:[%s1 + $0xb0] sm:$0xf]
  %v96 = vld [vmem:[%s1 + $0xb4] sm:$0xf]
  %v97 = vld [vmem:[%s1 + $0xb8] sm:$0xf]
  %v98 = vld [vmem:[%s1 + $0xbc] sm:$0xf]
  %v99 = vld [vmem:[%s1 + $0xc0] sm:$0xf]
  %v100 = vld [vmem:[%s1 + $0xc4] sm:$0xf]
  %v101 = vld [vmem:[%s1 + $0xc8] sm:$0xf]
  %v102 = vld [vmem:[%s1 + $0xcc] sm:$0xf]
  %v103 = vld [vmem:[%s1 + $0xd0] sm:$0xf]
  %v104 = vld [vmem:[%s1 + $0xd4] sm:$0xf]
  %v105 = vld [vmem:[%s1 + $0xd8] sm:$0xf]
  %v106 = vld [vmem:[%s1 + $0xdc] sm:$0xf]
  %v107 = vld [vmem:[%s1 + $0xe0] sm:$0xf]
  %v108 = vld [vmem:[%s1 + $0xe4] sm:$0xf]
  %v109 = vld [vmem:[%s1 + $0xe8] sm:$0xf]
  %v110 = vld [vmem:[%s1 + $0xec] sm:$0xf]
  %v111 = vld [vmem:[%s1 + $0xf0] sm:$0xf]
  %v112 = vld [vmem:[%s1 + $0xf4] sm:$0xf]
  %v113 = vld [vmem:[%s1 + $0xf8] sm:$0xf]
  %v114 = vld [vmem:[%s1 + $0xfc] sm:$0xf]
  %v115 = vld [vmem:[%s2] sm:$0xff]
  %v116 = vld [vmem:[%s2 + $0x8] sm:$0xff]
  %v117 = vld [vmem:[%s2 + $0x10] sm:$0xff]
  %v118 = vld [vmem:[%s2 + $0x18] sm:$0xff]
  %v119 = vld [vmem:[%s2 + $0x20] sm:$0xff]
  %v120 = vld [vmem:[%s2 + $0x28] sm:$0xff]
  %v121 = vld [vmem:[%s2 + $0x30] sm:$0xff]
  %v122 = vld [vmem:[%s2 + $0x38] sm:$0xff]
  %v123 = vld [vmem:[%s2 + $0x40] sm:$0xff]
  %v124 = vld [vmem:[%s2 + $0x48] sm:$0xff]
  %v125 = vld [vmem:[%s2 + $0x50] sm:$0xff]
  %v126 = vld [vmem:[%s2 + $0x58] sm:$0xff]
  %v127 = vld [vmem:[%s2 + $0x60] sm:$0xff]
  %v128 = vld [vmem:[%s2 + $0x68] sm:$0xff]
  %v129 = vld [vmem:[%s2 + $0x70] sm:$0xff]
  %v130 = vld [vmem:[%s2 + $0x78] sm:$0xff]
  %v131 = vld [vmem:[%s2 + $0x80] sm:$0xff]
  %v132 = vld [vmem:[%s2 + $0x88] sm:$0xff]
  %v133 = vld [vmem:[%s2 + $0x90] sm:$0xff]
  %v134 = vld [vmem:[%s2 + $0x98] sm:$0xff]
  %v135 = vld [vmem:[%s2 + $0xa0] sm:$0xff]
  %v136 = vld [vmem:[%s2 + $0xa8] sm:$0xff]
  %v137 = vld [vmem:[%s2 + $0xb0] sm:$0xff]
  %v138 = vld [vmem:[%s2 + $0xb8] sm:$0xff]
  %v139 = vld [vmem:[%s2 + $0xc0] sm:$0xff]
  %v140 = vld [vmem:[%s2 + $0xc8] sm:$0xff]
  %v141 = vld [vmem:[%s2 + $0xd0] sm:$0xff]
  %v142 = vld [vmem:[%s2 + $0xd8] sm:$0xff]
  %v143 = vld [vmem:[%s2 + $0xe0] sm:$0xff]
  %v144 = vld [vmem:[%s2 + $0xe8] sm:$0xff]
  %v145 = vld [vmem:[%s2 + $0xf0] sm:$0xff]
  %v146 = vld [vmem:[%s2 + $0xf8] sm:$0xff]
  %v147 = vld [vmem:[%s2 + $0x100] sm:$0xff]
  %v148 = vld [vmem:[%s2 + $0x108] sm:$0xff]
  %v149 = vld [vmem:[%s2 + $0x110] sm:$0xff]
  %v150 = vld [vmem:[%s2 + $0x118] sm:$0xff]
  %v151 = vld [vmem:[%s2 + $0x120] sm:$0xff]
  %v152 = vld [vmem:[%s2 + $0x128] sm:$0xff]
  %v153 = vld [vmem:[%s2 + $0x130] sm:$0xff]
  %v154 = vld [vmem:[%s2 + $0x138] sm:$0xff]
  %v155 = vld [vmem:[%s2 + $0x140] sm:$0xff]
  %v156 = vld [vmem:[%s2 + $0x148] sm:$0xff]
  %v157 = vld [vmem:[%s2 + $0x150] sm:$0xff]
  %v158 = vld [vmem:[%s2 + $0x158] sm:$0xff]
  %v159 = vld [vmem:[%s2 + $0x160] sm:$0xff]
  %v160 = vld [vmem:[%s2 + $0x168] sm:$0xff]
  %v161 = vld [vmem:[%s2 + $0x170] sm:$0xff]
  %v162 = vld [vmem:[%s2 + $0x178] sm:$0xff]
  %v163 = vld [vmem:[%s2 + $0x180] sm:$0xff]
  %v164 = vld [vmem:[%s2 + $0x188] sm:$0xff]
  %v165 = vld [vmem:[%s2 + $0x190] sm:$0xff]
  %v166 = vld [vmem:[%s2 + $0x198] sm:$0xff]
  %v167 = vld [vmem:[%s2 + $0x1a0] sm:$0xff]
  %v168 = vld [vmem:[%s2 + $0x1a8] sm:$0xff]
  %v169 = vld [vmem:[%s2 + $0x1b0] sm:$0xff]
  %v170 = vld [vmem:[%s2 + $0x1b8] sm:$0xff]
  %v171 = vld [vmem:[%s2 + $0x1c0] sm:$0xff]
  %v172 = vld [vmem:[%s2 + $0x1c8] sm:$0xff]
  %v173 = vld [vmem:[%s2 + $0x1d0] sm:$0xff]
  %v174 = vld [vmem:[%s2 + $0x1d8] sm:$0xff]
  %v175 = vld [vmem:[%s2 + $0x1e0] sm:$0xff]
  %v176 = vld [vmem:[%s2 + $0x1e8] sm:$0xff]
  %v177 = vld [vmem:[%s2 + $0x1f0] sm:$0xff]
  %v178 = vld [vmem:[%s2 + $0x1f8] sm:$0xff]
  %180 = vset.pattern.permute.xlu0 0
  %181 = vperm.xlu0 %180, %v115
  %v182 = vpop.permute.xlu0 %181
  %185 = vset.pattern.permute.xlu0 0
  %186 = vperm.xlu0 %185, %v116
  %v187 = vpop.permute.xlu0 %186
  %190 = vset.pattern.permute.xlu0 0
  %191 = vperm.xlu0 %190, %v117
  %v192 = vpop.permute.xlu0 %191
  %195 = vset.pattern.permute.xlu0 0
  %196 = vperm.xlu0 %195, %v118
  %v197 = vpop.permute.xlu0 %196
  %200 = vset.pattern.permute.xlu0 0
  %201 = vperm.xlu0 %200, %v119
  %v202 = vpop.permute.xlu0 %201
  %205 = vset.pattern.permute.xlu0 0
  %206 = vperm.xlu0 %205, %v120
  %v207 = vpop.permute.xlu0 %206
  %210 = vset.pattern.permute.xlu0 0
  %211 = vperm.xlu0 %210, %v121
  %v212 = vpop.permute.xlu0 %211
  %215 = vset.pattern.permute.xlu0 0
  %216 = vperm.xlu0 %215, %v122
  %v217 = vpop.permute.xlu0 %216
  %220 = vset.pattern.permute.xlu0 0
  %221 = vperm.xlu0 %220, %v123
  %v222 = vpop.permute.xlu0 %221
  %225 = vset.pattern.permute.xlu0 0
  %226 = vperm.xlu0 %225, %v124
  %v227 = vpop.permute.xlu0 %226
  %230 = vset.pattern.permute.xlu0 0
  %231 = vperm.xlu0 %230, %v125
  %v232 = vpop.permute.xlu0 %231
  %235 = vset.pattern.permute.xlu0 0
  %236 = vperm.xlu0 %235, %v126
  %v237 = vpop.permute.xlu0 %236
  %240 = vset.pattern.permute.xlu0 0
  %241 = vperm.xlu0 %240, %v127
  %v242 = vpop.permute.xlu0 %241
  %245 = vset.pattern.permute.xlu0 0
  %246 = vperm.xlu0 %245, %v128
  %v247 = vpop.permute.xlu0 %246
  %250 = vset.pattern.permute.xlu0 0
  %251 = vperm.xlu0 %250, %v129
  %v252 = vpop.permute.xlu0 %251
  %255 = vset.pattern.permute.xlu0 0
  %256 = vperm.xlu0 %255, %v130
  %v257 = vpop.permute.xlu0 %256
  %260 = vset.pattern.permute.xlu0 0
  %261 = vperm.xlu0 %260, %v131
  %v262 = vpop.permute.xlu0 %261
  %265 = vset.pattern.permute.xlu0 0
  %266 = vperm.xlu0 %265, %v132
  %v267 = vpop.permute.xlu0 %266
  %270 = vset.pattern.permute.xlu0 0
  %271 = vperm.xlu0 %270, %v133
  %v272 = vpop.permute.xlu0 %271
  %275 = vset.pattern.permute.xlu0 0
  %276 = vperm.xlu0 %275, %v134
  %v277 = vpop.permute.xlu0 %276
  %280 = vset.pattern.permute.xlu0 0
  %281 = vperm.xlu0 %280, %v135
  %v282 = vpop.permute.xlu0 %281
  %285 = vset.pattern.permute.xlu0 0
  %286 = vperm.xlu0 %285, %v136
  %v287 = vpop.permute.xlu0 %286
  %290 = vset.pattern.permute.xlu0 0
  %291 = vperm.xlu0 %290, %v137
  %v292 = vpop.permute.xlu0 %291
  %295 = vset.pattern.permute.xlu0 0
  %296 = vperm.xlu0 %295, %v138
  %v297 = vpop.permute.xlu0 %296
  %300 = vset.pattern.permute.xlu0 0
  %301 = vperm.xlu0 %300, %v139
  %v302 = vpop.permute.xlu0 %301
  %305 = vset.pattern.permute.xlu0 0
  %306 = vperm.xlu0 %305, %v140
  %v307 = vpop.permute.xlu0 %306
  %310 = vset.pattern.permute.xlu0 0
  %311 = vperm.xlu0 %310, %v141
  %v312 = vpop.permute.xlu0 %311
  %315 = vset.pattern.permute.xlu0 0
  %316 = vperm.xlu0 %315, %v142
  %v317 = vpop.permute.xlu0 %316
  %320 = vset.pattern.permute.xlu0 0
  %321 = vperm.xlu0 %320, %v143
  %v322 = vpop.permute.xlu0 %321
  %325 = vset.pattern.permute.xlu0 0
  %326 = vperm.xlu0 %325, %v144
  %v327 = vpop.permute.xlu0 %326
  %330 = vset.pattern.permute.xlu0 0
  %331 = vperm.xlu0 %330, %v145
  %v332 = vpop.permute.xlu0 %331
  %335 = vset.pattern.permute.xlu0 0
  %336 = vperm.xlu0 %335, %v146
  %v337 = vpop.permute.xlu0 %336
  %340 = vset.pattern.permute.xlu0 0
  %341 = vperm.xlu0 %340, %v147
  %v342 = vpop.permute.xlu0 %341
  %345 = vset.pattern.permute.xlu0 0
  %346 = vperm.xlu0 %345, %v148
  %v347 = vpop.permute.xlu0 %346
  %350 = vset.pattern.permute.xlu0 0
  %351 = vperm.xlu0 %350, %v149
  %v352 = vpop.permute.xlu0 %351
  %355 = vset.pattern.permute.xlu0 0
  %356 = vperm.xlu0 %355, %v150
  %v357 = vpop.permute.xlu0 %356
  %360 = vset.pattern.permute.xlu0 0
  %361 = vperm.xlu0 %360, %v151
  %v362 = vpop.permute.xlu0 %361
  %365 = vset.pattern.permute.xlu0 0
  %366 = vperm.xlu0 %365, %v152
  %v367 = vpop.permute.xlu0 %366
  %370 = vset.pattern.permute.xlu0 0
  %371 = vperm.xlu0 %370, %v153
  %v372 = vpop.permute.xlu0 %371
  %375 = vset.pattern.permute.xlu0 0
  %376 = vperm.xlu0 %375, %v154
  %v377 = vpop.permute.xlu0 %376
  %380 = vset.pattern.permute.xlu0 0
  %381 = vperm.xlu0 %380, %v155
  %v382 = vpop.permute.xlu0 %381
  %385 = vset.pattern.permute.xlu0 0
  %386 = vperm.xlu0 %385, %v156
  %v387 = vpop.permute.xlu0 %386
  %390 = vset.pattern.permute.xlu0 0
  %391 = vperm.xlu0 %390, %v157
  %v392 = vpop.permute.xlu0 %391
  %395 = vset.pattern.permute.xlu0 0
  %396 = vperm.xlu0 %395, %v158
  %v397 = vpop.permute.xlu0 %396
  %400 = vset.pattern.permute.xlu0 0
  %401 = vperm.xlu0 %400, %v159
  %v402 = vpop.permute.xlu0 %401
  %405 = vset.pattern.permute.xlu0 0
  %406 = vperm.xlu0 %405, %v160
  %v407 = vpop.permute.xlu0 %406
  %410 = vset.pattern.permute.xlu0 0
  %411 = vperm.xlu0 %410, %v161
  %v412 = vpop.permute.xlu0 %411
  %415 = vset.pattern.permute.xlu0 0
  %416 = vperm.xlu0 %415, %v162
  %v417 = vpop.permute.xlu0 %416
  %420 = vset.pattern.permute.xlu0 0
  %421 = vperm.xlu0 %420, %v163
  %v422 = vpop.permute.xlu0 %421
  %425 = vset.pattern.permute.xlu0 0
  %426 = vperm.xlu0 %425, %v164
  %v427 = vpop.permute.xlu0 %426
  %430 = vset.pattern.permute.xlu0 0
  %431 = vperm.xlu0 %430, %v165
  %v432 = vpop.permute.xlu0 %431
  %435 = vset.pattern.permute.xlu0 0
  %436 = vperm.xlu0 %435, %v166
  %v437 = vpop.permute.xlu0 %436
  %440 = vset.pattern.permute.xlu0 0
  %441 = vperm.xlu0 %440, %v167
  %v442 = vpop.permute.xlu0 %441
  %445 = vset.pattern.permute.xlu0 0
  %446 = vperm.xlu0 %445, %v168
  %v447 = vpop.permute.xlu0 %446
  %450 = vset.pattern.permute.xlu0 0
  %451 = vperm.xlu0 %450, %v169
  %v452 = vpop.permute.xlu0 %451
  %455 = vset.pattern.permute.xlu0 0
  %456 = vperm.xlu0 %455, %v170
  %v457 = vpop.permute.xlu0 %456
  %460 = vset.pattern.permute.xlu0 0
  %461 = vperm.xlu0 %460, %v171
  %v462 = vpop.permute.xlu0 %461
  %465 = vset.pattern.permute.xlu0 0
  %466 = vperm.xlu0 %465, %v172
  %v467 = vpop.permute.xlu0 %466
  %470 = vset.pattern.permute.xlu0 0
  %471 = vperm.xlu0 %470, %v173
  %v472 = vpop.permute.xlu0 %471
  %475 = vset.pattern.permute.xlu0 0
  %476 = vperm.xlu0 %475, %v174
  %v477 = vpop.permute.xlu0 %476
  %480 = vset.pattern.permute.xlu0 0
  %481 = vperm.xlu0 %480, %v175
  %v482 = vpop.permute.xlu0 %481
  %485 = vset.pattern.permute.xlu0 0
  %486 = vperm.xlu0 %485, %v176
  %v487 = vpop.permute.xlu0 %486
  %490 = vset.pattern.permute.xlu0 0
  %491 = vperm.xlu0 %490, %v177
  %v492 = vpop.permute.xlu0 %491
  %495 = vset.pattern.permute.xlu0 0
  %496 = vperm.xlu0 %495, %v178
  %v497 = vpop.permute.xlu0 %496
  %v563 = vunpack.c.l.b16 %v51
  %v564 = vunpack.c.l.b16 %v52
  %v565 = vunpack.c.l.b16 %v53
  %v566 = vunpack.c.l.b16 %v54
  %v567 = vunpack.c.l.b16 %v55
  %v568 = vunpack.c.l.b16 %v56
  %v569 = vunpack.c.l.b16 %v57
  %v570 = vunpack.c.l.b16 %v58
  %v571 = vunpack.c.l.b16 %v59
  %v572 = vunpack.c.l.b16 %v60
  %v573 = vunpack.c.l.b16 %v61
  %v574 = vunpack.c.l.b16 %v62
  %v575 = vunpack.c.l.b16 %v63
  %v576 = vunpack.c.l.b16 %v64
  %v577 = vunpack.c.l.b16 %v65
  %v578 = vunpack.c.l.b16 %v66
  %v579 = vunpack.c.l.b16 %v67
  %v580 = vunpack.c.l.b16 %v68
  %v581 = vunpack.c.l.b16 %v69
  %v582 = vunpack.c.l.b16 %v70
  %v583 = vunpack.c.l.b16 %v71
  %v584 = vunpack.c.l.b16 %v72
  %v585 = vunpack.c.l.b16 %v73
  %v586 = vunpack.c.l.b16 %v74
  %v587 = vunpack.c.l.b16 %v75
  %v588 = vunpack.c.l.b16 %v76
  %v589 = vunpack.c.l.b16 %v77
  %v590 = vunpack.c.l.b16 %v78
  %v591 = vunpack.c.l.b16 %v79
  %v592 = vunpack.c.l.b16 %v80
  %v593 = vunpack.c.l.b16 %v81
  %v594 = vunpack.c.l.b16 %v82
  %v595 = vunpack.c.l.b16 %v83
  %v596 = vunpack.c.l.b16 %v84
  %v597 = vunpack.c.l.b16 %v85
  %v598 = vunpack.c.l.b16 %v86
  %v599 = vunpack.c.l.b16 %v87
  %v600 = vunpack.c.l.b16 %v88
  %v601 = vunpack.c.l.b16 %v89
  %v602 = vunpack.c.l.b16 %v90
  %v603 = vunpack.c.l.b16 %v91
  %v604 = vunpack.c.l.b16 %v92
  %v605 = vunpack.c.l.b16 %v93
  %v606 = vunpack.c.l.b16 %v94
  %v607 = vunpack.c.l.b16 %v95
  %v608 = vunpack.c.l.b16 %v96
  %v609 = vunpack.c.l.b16 %v97
  %v610 = vunpack.c.l.b16 %v98
  %v611 = vunpack.c.l.b16 %v99
  %v612 = vunpack.c.l.b16 %v100
  %v613 = vunpack.c.l.b16 %v101
  %v614 = vunpack.c.l.b16 %v102
  %v615 = vunpack.c.l.b16 %v103
  %v616 = vunpack.c.l.b16 %v104
  %v617 = vunpack.c.l.b16 %v105
  %v618 = vunpack.c.l.b16 %v106
  %v619 = vunpack.c.l.b16 %v107
  %v620 = vunpack.c.l.b16 %v108
  %v621 = vunpack.c.l.b16 %v109
  %v622 = vunpack.c.l.b16 %v110
  %v623 = vunpack.c.l.b16 %v111
  %v624 = vunpack.c.l.b16 %v112
  %v625 = vunpack.c.l.b16 %v113
  %v626 = vunpack.c.l.b16 %v114
  %v627 = vpack.c.b16 %v564, %v563
  %v628 = vpack.c.b16 %v566, %v565
  %v629 = vpack.c.b16 %v568, %v567
  %v630 = vpack.c.b16 %v570, %v569
  %v631 = vpack.c.b16 %v572, %v571
  %v632 = vpack.c.b16 %v574, %v573
  %v633 = vpack.c.b16 %v576, %v575
  %v634 = vpack.c.b16 %v578, %v577
  %v635 = vpack.c.b16 %v580, %v579
  %v636 = vpack.c.b16 %v582, %v581
  %v637 = vpack.c.b16 %v584, %v583
  %v638 = vpack.c.b16 %v586, %v585
  %v639 = vpack.c.b16 %v588, %v587
  %v640 = vpack.c.b16 %v590, %v589
  %v641 = vpack.c.b16 %v592, %v591
  %v642 = vpack.c.b16 %v594, %v593
  %v643 = vpack.c.b16 %v596, %v595
  %v644 = vpack.c.b16 %v598, %v597
  %v645 = vpack.c.b16 %v600, %v599
  %v646 = vpack.c.b16 %v602, %v601
  %v647 = vpack.c.b16 %v604, %v603
  %v648 = vpack.c.b16 %v606, %v605
  %v649 = vpack.c.b16 %v608, %v607
  %v650 = vpack.c.b16 %v610, %v609
  %v651 = vpack.c.b16 %v612, %v611
  %v652 = vpack.c.b16 %v614, %v613
  %v653 = vpack.c.b16 %v616, %v615
  %v654 = vpack.c.b16 %v618, %v617
  %v655 = vpack.c.b16 %v620, %v619
  %v656 = vpack.c.b16 %v622, %v621
  %v657 = vpack.c.b16 %v624, %v623
  %v658 = vpack.c.b16 %v626, %v625
  %691 = vmatpush.bf16.xpose.msra.mxu0 %v50
  %692 = vmatpush.bf16.xpose.msra.mxu0 %v49
  %693 = vmatpush.bf16.xpose.msra.mxu0 %v48
  %694 = vmatpush.bf16.xpose.msra.mxu0 %v47
  %695 = vmatpush.bf16.xpose.msra.mxu0 %v46
  %696 = vmatpush.bf16.xpose.msra.mxu0 %v45
  %697 = vmatpush.bf16.xpose.msra.mxu0 %v44
  %698 = vmatpush.bf16.xpose.msra.mxu0 %v43
  %699 = vmatmul.bf16.gmra.mxu0 %v627
  %v700 = vpop.f32.mrf.mxu0
  %v701 = vadd.f32 %v182, %v700
  %v702 = vpop.f32.mrf.mxu0
  %v703 = vadd.f32 %v187, %v702
  %704 = vmatmul.bf16.gmra.mxu0 %v628
  %v705 = vpop.f32.mrf.mxu0
  %v706 = vadd.f32 %v192, %v705
  %v707 = vpop.f32.mrf.mxu0
  %v708 = vadd.f32 %v197, %v707
  %709 = vmatmul.bf16.gmra.mxu0 %v629
  %v710 = vpop.f32.mrf.mxu0
  %v711 = vadd.f32 %v202, %v710
  %v712 = vpop.f32.mrf.mxu0
  %v713 = vadd.f32 %v207, %v712
  %714 = vmatmul.bf16.gmra.mxu0 %v630
  %v715 = vpop.f32.mrf.mxu0
  %v716 = vadd.f32 %v212, %v715
  %v717 = vpop.f32.mrf.mxu0
  %v718 = vadd.f32 %v217, %v717
  %719 = vmatmul.bf16.gmra.mxu0 %v631
  %v720 = vpop.f32.mrf.mxu0
  %v721 = vadd.f32 %v222, %v720
  %v722 = vpop.f32.mrf.mxu0
  %v723 = vadd.f32 %v227, %v722
  %724 = vmatmul.bf16.gmra.mxu0 %v632
  %v725 = vpop.f32.mrf.mxu0
  %v726 = vadd.f32 %v232, %v725
  %v727 = vpop.f32.mrf.mxu0
  %v728 = vadd.f32 %v237, %v727
  %729 = vmatmul.bf16.gmra.mxu0 %v633
  %v730 = vpop.f32.mrf.mxu0
  %v731 = vadd.f32 %v242, %v730
  %v732 = vpop.f32.mrf.mxu0
  %v733 = vadd.f32 %v247, %v732
  %734 = vmatmul.bf16.gmra.mxu0 %v634
  %v735 = vpop.f32.mrf.mxu0
  %v736 = vadd.f32 %v252, %v735
  %v737 = vpop.f32.mrf.mxu0
  %v738 = vadd.f32 %v257, %v737
  %739 = vmatmul.bf16.gmra.mxu0 %v635
  %v740 = vpop.f32.mrf.mxu0
  %v741 = vadd.f32 %v262, %v740
  %v742 = vpop.f32.mrf.mxu0
  %v743 = vadd.f32 %v267, %v742
  %744 = vmatmul.bf16.gmra.mxu0 %v636
  %v745 = vpop.f32.mrf.mxu0
  %v746 = vadd.f32 %v272, %v745
  %v747 = vpop.f32.mrf.mxu0
  %v748 = vadd.f32 %v277, %v747
  %749 = vmatmul.bf16.gmra.mxu0 %v637
  %v750 = vpop.f32.mrf.mxu0
  %v751 = vadd.f32 %v282, %v750
  %v752 = vpop.f32.mrf.mxu0
  %v753 = vadd.f32 %v287, %v752
  %754 = vmatmul.bf16.gmra.mxu0 %v638
  %v755 = vpop.f32.mrf.mxu0
  %v756 = vadd.f32 %v292, %v755
  %v757 = vpop.f32.mrf.mxu0
  %v758 = vadd.f32 %v297, %v757
  %759 = vmatmul.bf16.gmra.mxu0 %v639
  %v760 = vpop.f32.mrf.mxu0
  %v761 = vadd.f32 %v302, %v760
  %v762 = vpop.f32.mrf.mxu0
  %v763 = vadd.f32 %v307, %v762
  %764 = vmatmul.bf16.gmra.mxu0 %v640
  %v765 = vpop.f32.mrf.mxu0
  %v766 = vadd.f32 %v312, %v765
  %v767 = vpop.f32.mrf.mxu0
  %v768 = vadd.f32 %v317, %v767
  %769 = vmatmul.bf16.gmra.mxu0 %v641
  %v770 = vpop.f32.mrf.mxu0
  %v771 = vadd.f32 %v322, %v770
  %v772 = vpop.f32.mrf.mxu0
  %v773 = vadd.f32 %v327, %v772
  %774 = vmatmul.bf16.gmra.mxu0 %v642
  %v775 = vpop.f32.mrf.mxu0
  %v776 = vadd.f32 %v332, %v775
  %v777 = vpop.f32.mrf.mxu0
  %v778 = vadd.f32 %v337, %v777
  %779 = vmatmul.bf16.gmra.mxu0 %v643
  %v780 = vpop.f32.mrf.mxu0
  %v781 = vadd.f32 %v342, %v780
  %v782 = vpop.f32.mrf.mxu0
  %v783 = vadd.f32 %v347, %v782
  %784 = vmatmul.bf16.gmra.mxu0 %v644
  %v785 = vpop.f32.mrf.mxu0
  %v786 = vadd.f32 %v352, %v785
  %v787 = vpop.f32.mrf.mxu0
  %v788 = vadd.f32 %v357, %v787
  %789 = vmatmul.bf16.gmra.mxu0 %v645
  %v790 = vpop.f32.mrf.mxu0
  %v791 = vadd.f32 %v362, %v790
  %v792 = vpop.f32.mrf.mxu0
  %v793 = vadd.f32 %v367, %v792
  %794 = vmatmul.bf16.gmra.mxu0 %v646
  %v795 = vpop.f32.mrf.mxu0
  %v796 = vadd.f32 %v372, %v795
  %v797 = vpop.f32.mrf.mxu0
  %v798 = vadd.f32 %v377, %v797
  %799 = vmatmul.bf16.gmra.mxu0 %v647
  %v800 = vpop.f32.mrf.mxu0
  %v801 = vadd.f32 %v382, %v800
  %v802 = vpop.f32.mrf.mxu0
  %v803 = vadd.f32 %v387, %v802
  %804 = vmatmul.bf16.gmra.mxu0 %v648
  %v805 = vpop.f32.mrf.mxu0
  %v806 = vadd.f32 %v392, %v805
  %v807 = vpop.f32.mrf.mxu0
  %v808 = vadd.f32 %v397, %v807
  %809 = vmatmul.bf16.gmra.mxu0 %v649
  %v810 = vpop.f32.mrf.mxu0
  %v811 = vadd.f32 %v402, %v810
  %v812 = vpop.f32.mrf.mxu0
  %v813 = vadd.f32 %v407, %v812
  %814 = vmatmul.bf16.gmra.mxu0 %v650
  %v815 = vpop.f32.mrf.mxu0
  %v816 = vadd.f32 %v412, %v815
  %v817 = vpop.f32.mrf.mxu0
  %v818 = vadd.f32 %v417, %v817
  %819 = vmatmul.bf16.gmra.mxu0 %v651
  %v820 = vpop.f32.mrf.mxu0
  %v821 = vadd.f32 %v422, %v820
  %v822 = vpop.f32.mrf.mxu0
  %v823 = vadd.f32 %v427, %v822
  %824 = vmatmul.bf16.gmra.mxu0 %v652
  %v825 = vpop.f32.mrf.mxu0
  %v826 = vadd.f32 %v432, %v825
  %v827 = vpop.f32.mrf.mxu0
  %v828 = vadd.f32 %v437, %v827
  %829 = vmatmul.bf16.gmra.mxu0 %v653
  %v830 = vpop.f32.mrf.mxu0
  %v831 = vadd.f32 %v442, %v830
  %v832 = vpop.f32.mrf.mxu0
  %v833 = vadd.f32 %v447, %v832
  %834 = vmatmul.bf16.gmra.mxu0 %v654
  %v835 = vpop.f32.mrf.mxu0
  %v836 = vadd.f32 %v452, %v835
  %v837 = vpop.f32.mrf.mxu0
  %v838 = vadd.f32 %v457, %v837
  %839 = vmatmul.bf16.gmra.mxu0 %v655
  %v840 = vpop.f32.mrf.mxu0
  %v841 = vadd.f32 %v462, %v840
  %v842 = vpop.f32.mrf.mxu0
  %v843 = vadd.f32 %v467, %v842
  %844 = vmatmul.bf16.gmra.mxu0 %v656
  %v845 = vpop.f32.mrf.mxu0
  %v846 = vadd.f32 %v472, %v845
  %v847 = vpop.f32.mrf.mxu0
  %v848 = vadd.f32 %v477, %v847
  %849 = vmatmul.bf16.gmra.mxu0 %v657
  %v850 = vpop.f32.mrf.mxu0
  %v851 = vadd.f32 %v482, %v850
  %v852 = vpop.f32.mrf.mxu0
  %v853 = vadd.f32 %v487, %v852
  %854 = vmatmul.bf16.gmra.mxu0 %v658
  %v855 = vpop.f32.mrf.mxu0
  %v856 = vadd.f32 %v492, %v855
  %v857 = vpop.f32.mrf.mxu0
  %v858 = vadd.f32 %v497, %v857
  %859 = vdwg.mxu0
  %v860 = vmax.f32 %v701, 0.0
  %v861 = vmax.f32 %v703, 0.0
  %v862 = vmax.f32 %v706, 0.0
  %v863 = vmax.f32 %v708, 0.0
  %v864 = vmax.f32 %v711, 0.0
  %v865 = vmax.f32 %v713, 0.0
  %v866 = vmax.f32 %v716, 0.0
  %v867 = vmax.f32 %v718, 0.0
  %v868 = vmax.f32 %v721, 0.0
  %v869 = vmax.f32 %v723, 0.0
  %v870 = vmax.f32 %v726, 0.0
  %v871 = vmax.f32 %v728, 0.0
  %v872 = vmax.f32 %v731, 0.0
  %v873 = vmax.f32 %v733, 0.0
  %v874 = vmax.f32 %v736, 0.0
  %v875 = vmax.f32 %v738, 0.0
  %v876 = vmax.f32 %v741, 0.0
  %v877 = vmax.f32 %v743, 0.0
  %v878 = vmax.f32 %v746, 0.0
  %v879 = vmax.f32 %v748, 0.0
  %v880 = vmax.f32 %v751, 0.0
  %v881 = vmax.f32 %v753, 0.0
  %v882 = vmax.f32 %v756, 0.0
  %v883 = vmax.f32 %v758, 0.0
  %v884 = vmax.f32 %v761, 0.0
  %v885 = vmax.f32 %v763, 0.0
  %v886 = vmax.f32 %v766, 0.0
  %v887 = vmax.f32 %v768, 0.0
  %v888 = vmax.f32 %v771, 0.0
  %v889 = vmax.f32 %v773, 0.0
  %v890 = vmax.f32 %v776, 0.0
  %v891 = vmax.f32 %v778, 0.0
  %v892 = vmax.f32 %v781, 0.0
  %v893 = vmax.f32 %v783, 0.0
  %v894 = vmax.f32 %v786, 0.0
  %v895 = vmax.f32 %v788, 0.0
  %v896 = vmax.f32 %v791, 0.0
  %v897 = vmax.f32 %v793, 0.0
  %v898 = vmax.f32 %v796, 0.0
  %v899 = vmax.f32 %v798, 0.0
  %v900 = vmax.f32 %v801, 0.0
  %v901 = vmax.f32 %v803, 0.0
  %v902 = vmax.f32 %v806, 0.0
  %v903 = vmax.f32 %v808, 0.0
  %v904 = vmax.f32 %v811, 0.0
  %v905 = vmax.f32 %v813, 0.0
  %v906 = vmax.f32 %v816, 0.0
  %v907 = vmax.f32 %v818, 0.0
  %v908 = vmax.f32 %v821, 0.0
  %v909 = vmax.f32 %v823, 0.0
  %v910 = vmax.f32 %v826, 0.0
  %v911 = vmax.f32 %v828, 0.0
  %v912 = vmax.f32 %v831, 0.0
  %v913 = vmax.f32 %v833, 0.0
  %v914 = vmax.f32 %v836, 0.0
  %v915 = vmax.f32 %v838, 0.0
  %v916 = vmax.f32 %v841, 0.0
  %v917 = vmax.f32 %v843, 0.0
  %v918 = vmax.f32 %v846, 0.0
  %v919 = vmax.f32 %v848, 0.0
  %v920 = vmax.f32 %v851, 0.0
  %v921 = vmax.f32 %v853, 0.0
  %v922 = vmax.f32 %v856, 0.0
  %v923 = vmax.f32 %v858, 0.0
  %v924 = vld [vmem:[%s3] sm:$0xff]
  %v925 = vld [vmem:[%s3 + $0x8] sm:$0xff]
  %v926 = vld [vmem:[%s3 + $0x10] sm:$0xff]
  %v927 = vld [vmem:[%s3 + $0x18] sm:$0xff]
  %v928 = vld [vmem:[%s3 + $0x20] sm:$0xff]
  %v929 = vld [vmem:[%s3 + $0x28] sm:$0xff]
  %v930 = vld [vmem:[%s3 + $0x30] sm:$0xff]
  %v931 = vld [vmem:[%s3 + $0x38] sm:$0xff]
  %v932 = vld [vmem:[%s3 + $0x40] sm:$0xff]
  %v933 = vld [vmem:[%s3 + $0x48] sm:$0xff]
  %v934 = vld [vmem:[%s3 + $0x50] sm:$0xff]
  %v935 = vld [vmem:[%s3 + $0x58] sm:$0xff]
  %v936 = vld [vmem:[%s3 + $0x60] sm:$0xff]
  %v937 = vld [vmem:[%s3 + $0x68] sm:$0xff]
  %v938 = vld [vmem:[%s3 + $0x70] sm:$0xff]
  %v939 = vld [vmem:[%s3 + $0x78] sm:$0xff]
  %v940 = vld [vmem:[%s3 + $0x80] sm:$0xff]
  %v941 = vld [vmem:[%s3 + $0x88] sm:$0xff]
  %v942 = vld [vmem:[%s3 + $0x90] sm:$0xff]
  %v943 = vld [vmem:[%s3 + $0x98] sm:$0xff]
  %v944 = vld [vmem:[%s3 + $0xa0] sm:$0xff]
  %v945 = vld [vmem:[%s3 + $0xa8] sm:$0xff]
  %v946 = vld [vmem:[%s3 + $0xb0] sm:$0xff]
  %v947 = vld [vmem:[%s3 + $0xb8] sm:$0xff]
  %v948 = vld [vmem:[%s3 + $0xc0] sm:$0xff]
  %v949 = vld [vmem:[%s3 + $0xc8] sm:$0xff]
  %v950 = vld [vmem:[%s3 + $0xd0] sm:$0xff]
  %v951 = vld [vmem:[%s3 + $0xd8] sm:$0xff]
  %v952 = vld [vmem:[%s3 + $0xe0] sm:$0xff]
  %v953 = vld [vmem:[%s3 + $0xe8] sm:$0xff]
  %v954 = vld [vmem:[%s3 + $0xf0] sm:$0xff]
  %v955 = vld [vmem:[%s3 + $0xf8] sm:$0xff]
  %v956 = vpack.c.bf16 %v861, %v860
  %v957 = vpack.c.bf16 %v863, %v862
  %v958 = vpack.c.bf16 %v865, %v864
  %v959 = vpack.c.bf16 %v867, %v866
  %v960 = vpack.c.bf16 %v869, %v868
  %v961 = vpack.c.bf16 %v871, %v870
  %v962 = vpack.c.bf16 %v873, %v872
  %v963 = vpack.c.bf16 %v875, %v874
  %v964 = vpack.c.bf16 %v877, %v876
  %v965 = vpack.c.bf16 %v879, %v878
  %v966 = vpack.c.bf16 %v881, %v880
  %v967 = vpack.c.bf16 %v883, %v882
  %v968 = vpack.c.bf16 %v885, %v884
  %v969 = vpack.c.bf16 %v887, %v886
  %v970 = vpack.c.bf16 %v889, %v888
  %v971 = vpack.c.bf16 %v891, %v890
  %v972 = vpack.c.bf16 %v893, %v892
  %v973 = vpack.c.bf16 %v895, %v894
  %v974 = vpack.c.bf16 %v897, %v896
  %v975 = vpack.c.bf16 %v899, %v898
  %v976 = vpack.c.bf16 %v901, %v900
  %v977 = vpack.c.bf16 %v903, %v902
  %v978 = vpack.c.bf16 %v905, %v904
  %v979 = vpack.c.bf16 %v907, %v906
  %v980 = vpack.c.bf16 %v909, %v908
  %v981 = vpack.c.bf16 %v911, %v910
  %v982 = vpack.c.bf16 %v913, %v912
  %v983 = vpack.c.bf16 %v915, %v914
  %v984 = vpack.c.bf16 %v917, %v916
  %v985 = vpack.c.bf16 %v919, %v918
  %v986 = vpack.c.bf16 %v921, %v920
  %v987 = vpack.c.bf16 %v923, %v922
  %v988 = vld [vmem:[%s4] sm:$0xff]
  %v989 = vld [vmem:[%s4 + $0x8] sm:$0xff]
  %v990 = vld [vmem:[%s4 + $0x10] sm:$0xff]
  %v991 = vld [vmem:[%s4 + $0x18] sm:$0xff]
  %v992 = vld [vmem:[%s4 + $0x20] sm:$0xff]
  %v993 = vld [vmem:[%s4 + $0x28] sm:$0xff]
  %v994 = vld [vmem:[%s4 + $0x30] sm:$0xff]
  %v995 = vld [vmem:[%s4 + $0x38] sm:$0xff]
  %v996 = vld [vmem:[%s4 + $0x40] sm:$0xff]
  %v997 = vld [vmem:[%s4 + $0x48] sm:$0xff]
  %v998 = vld [vmem:[%s4 + $0x50] sm:$0xff]
  %v999 = vld [vmem:[%s4 + $0x58] sm:$0xff]
  %v1000 = vld [vmem:[%s4 + $0x60] sm:$0xff]
  %v1001 = vld [vmem:[%s4 + $0x68] sm:$0xff]
  %v1002 = vld [vmem:[%s4 + $0x70] sm:$0xff]
  %v1003 = vld [vmem:[%s4 + $0x78] sm:$0xff]
  %1005 = vset.pattern.permute.xlu0 0
  %1006 = vperm.xlu0 %1005, %v988
  %v1007 = vpop.permute.xlu0 %1006
  %1010 = vset.pattern.permute.xlu0 0
  %1011 = vperm.xlu0 %1010, %v989
  %v1012 = vpop.permute.xlu0 %1011
  %1015 = vset.pattern.permute.xlu0 0
  %1016 = vperm.xlu0 %1015, %v990
  %v1017 = vpop.permute.xlu0 %1016
  %1020 = vset.pattern.permute.xlu0 0
  %1021 = vperm.xlu0 %1020, %v991
  %v1022 = vpop.permute.xlu0 %1021
  %1025 = vset.pattern.permute.xlu0 0
  %1026 = vperm.xlu0 %1025, %v992
  %v1027 = vpop.permute.xlu0 %1026
  %1030 = vset.pattern.permute.xlu0 0
  %1031 = vperm.xlu0 %1030, %v993
  %v1032 = vpop.permute.xlu0 %1031
  %1035 = vset.pattern.permute.xlu0 0
  %1036 = vperm.xlu0 %1035, %v994
  %v1037 = vpop.permute.xlu0 %1036
  %1040 = vset.pattern.permute.xlu0 0
  %1041 = vperm.xlu0 %1040, %v995
  %v1042 = vpop.permute.xlu0 %1041
  %1045 = vset.pattern.permute.xlu0 0
  %1046 = vperm.xlu0 %1045, %v996
  %v1047 = vpop.permute.xlu0 %1046
  %1050 = vset.pattern.permute.xlu0 0
  %1051 = vperm.xlu0 %1050, %v997
  %v1052 = vpop.permute.xlu0 %1051
  %1055 = vset.pattern.permute.xlu0 0
  %1056 = vperm.xlu0 %1055, %v998
  %v1057 = vpop.permute.xlu0 %1056
  %1060 = vset.pattern.permute.xlu0 0
  %1061 = vperm.xlu0 %1060, %v999
  %v1062 = vpop.permute.xlu0 %1061
  %1065 = vset.pattern.permute.xlu0 0
  %1066 = vperm.xlu0 %1065, %v1000
  %v1067 = vpop.permute.xlu0 %1066
  %1070 = vset.pattern.permute.xlu0 0
  %1071 = vperm.xlu0 %1070, %v1001
  %v1072 = vpop.permute.xlu0 %1071
  %1075 = vset.pattern.permute.xlu0 0
  %1076 = vperm.xlu0 %1075, %v1002
  %v1077 = vpop.permute.xlu0 %1076
  %1080 = vset.pattern.permute.xlu0 0
  %1081 = vperm.xlu0 %1080, %v1003
  %v1082 = vpop.permute.xlu0 %1081
  %v1116 = vunpack.c.l.b16 %v924
  %v1117 = vunpack.c.h.b16 %v924
  %v1118 = vunpack.c.l.b16 %v925
  %v1119 = vunpack.c.h.b16 %v925
  %v1120 = vunpack.c.l.b16 %v926
  %v1121 = vunpack.c.h.b16 %v926
  %v1122 = vunpack.c.l.b16 %v927
  %v1123 = vunpack.c.h.b16 %v927
  %v1124 = vunpack.c.l.b16 %v928
  %v1125 = vunpack.c.h.b16 %v928
  %v1126 = vunpack.c.l.b16 %v929
  %v1127 = vunpack.c.h.b16 %v929
  %v1128 = vunpack.c.l.b16 %v930
  %v1129 = vunpack.c.h.b16 %v930
  %v1130 = vunpack.c.l.b16 %v931
  %v1131 = vunpack.c.h.b16 %v931
  %v1132 = vunpack.c.l.b16 %v932
  %v1133 = vunpack.c.h.b16 %v932
  %v1134 = vunpack.c.l.b16 %v933
  %v1135 = vunpack.c.h.b16 %v933
  %v1136 = vunpack.c.l.b16 %v934
  %v1137 = vunpack.c.h.b16 %v934
  %v1138 = vunpack.c.l.b16 %v935
  %v1139 = vunpack.c.h.b16 %v935
  %v1140 = vunpack.c.l.b16 %v936
  %v1141 = vunpack.c.h.b16 %v936
  %v1142 = vunpack.c.l.b16 %v937
  %v1143 = vunpack.c.h.b16 %v937
  %v1144 = vunpack.c.l.b16 %v938
  %v1145 = vunpack.c.h.b16 %v938
  %v1146 = vunpack.c.l.b16 %v939
  %v1147 = vunpack.c.h.b16 %v939
  %v1148 = vunpack.c.l.b16 %v940
  %v1149 = vunpack.c.h.b16 %v940
  %v1150 = vunpack.c.l.b16 %v941
  %v1151 = vunpack.c.h.b16 %v941
  %v1152 = vunpack.c.l.b16 %v942
  %v1153 = vunpack.c.h.b16 %v942
  %v1154 = vunpack.c.l.b16 %v943
  %v1155 = vunpack.c.h.b16 %v943
  %v1156 = vunpack.c.l.b16 %v944
  %v1157 = vunpack.c.h.b16 %v944
  %v1158 = vunpack.c.l.b16 %v945
  %v1159 = vunpack.c.h.b16 %v945
  %v1160 = vunpack.c.l.b16 %v946
  %v1161 = vunpack.c.h.b16 %v946
  %v1162 = vunpack.c.l.b16 %v947
  %v1163 = vunpack.c.h.b16 %v947
  %v1164 = vunpack.c.l.b16 %v948
  %v1165 = vunpack.c.h.b16 %v948
  %v1166 = vunpack.c.l.b16 %v949
  %v1167 = vunpack.c.h.b16 %v949
  %v1168 = vunpack.c.l.b16 %v950
  %v1169 = vunpack.c.h.b16 %v950
  %v1170 = vunpack.c.l.b16 %v951
  %v1171 = vunpack.c.h.b16 %v951
  %v1172 = vunpack.c.l.b16 %v952
  %v1173 = vunpack.c.h.b16 %v952
  %v1174 = vunpack.c.l.b16 %v953
  %v1175 = vunpack.c.h.b16 %v953
  %v1176 = vunpack.c.l.b16 %v954
  %v1177 = vunpack.c.h.b16 %v954
  %v1178 = vunpack.c.l.b16 %v955
  %v1179 = vunpack.c.h.b16 %v955
  %v1180 = vpack.c.b16 %v1120, %v1116
  %v1181 = vpack.c.b16 %v1121, %v1117
  %v1182 = vpack.c.b16 %v1122, %v1118
  %v1183 = vpack.c.b16 %v1123, %v1119
  %v1184 = vpack.c.b16 %v1128, %v1124
  %v1185 = vpack.c.b16 %v1129, %v1125
  %v1186 = vpack.c.b16 %v1130, %v1126
  %v1187 = vpack.c.b16 %v1131, %v1127
  %v1188 = vpack.c.b16 %v1136, %v1132
  %v1189 = vpack.c.b16 %v1137, %v1133
  %v1190 = vpack.c.b16 %v1138, %v1134
  %v1191 = vpack.c.b16 %v1139, %v1135
  %v1192 = vpack.c.b16 %v1144, %v1140
  %v1193 = vpack.c.b16 %v1145, %v1141
  %v1194 = vpack.c.b16 %v1146, %v1142
  %v1195 = vpack.c.b16 %v1147, %v1143
  %v1196 = vpack.c.b16 %v1152, %v1148
  %v1197 = vpack.c.b16 %v1153, %v1149
  %v1198 = vpack.c.b16 %v1154, %v1150
  %v1199 = vpack.c.b16 %v1155, %v1151
  %v1200 = vpack.c.b16 %v1160, %v1156
  %v1201 = vpack.c.b16 %v1161, %v1157
  %v1202 = vpack.c.b16 %v1162, %v1158
  %v1203 = vpack.c.b16 %v1163, %v1159
  %v1204 = vpack.c.b16 %v1168, %v1164
  %v1205 = vpack.c.b16 %v1169, %v1165
  %v1206 = vpack.c.b16 %v1170, %v1166
  %v1207 = vpack.c.b16 %v1171, %v1167
  %v1208 = vpack.c.b16 %v1176, %v1172
  %v1209 = vpack.c.b16 %v1177, %v1173
  %v1210 = vpack.c.b16 %v1178, %v1174
  %v1211 = vpack.c.b16 %v1179, %v1175
  %1244 = vmatpush.bf16.msra.mxu0 %v963
  %1245 = vmatpush.bf16.msra.mxu0 %v962
  %1246 = vmatpush.bf16.msra.mxu0 %v961
  %1247 = vmatpush.bf16.msra.mxu0 %v960
  %1248 = vmatpush.bf16.msra.mxu0 %v959
  %1249 = vmatpush.bf16.msra.mxu0 %v958
  %1250 = vmatpush.bf16.msra.mxu0 %v957
  %1251 = vmatpush.bf16.msra.mxu0 %v956
  %1252 = vmatmul.bf16.gmra.mxu0 %v1180
  %v1253 = vpop.f32.mrf.mxu0
  %v1254 = vadd.f32 %v1007, %v1253
  %v1255 = vpop.f32.mrf.mxu0
  %v1256 = vadd.f32 %v1012, %v1255
  %1257 = vmatmul.bf16.gmra.mxu0 %v1184
  %v1258 = vpop.f32.mrf.mxu0
  %v1259 = vadd.f32 %v1017, %v1258
  %v1260 = vpop.f32.mrf.mxu0
  %v1261 = vadd.f32 %v1022, %v1260
  %1262 = vmatmul.bf16.gmra.mxu0 %v1188
  %v1263 = vpop.f32.mrf.mxu0
  %v1264 = vadd.f32 %v1027, %v1263
  %v1265 = vpop.f32.mrf.mxu0
  %v1266 = vadd.f32 %v1032, %v1265
  %1267 = vmatmul.bf16.gmra.mxu0 %v1192
  %v1268 = vpop.f32.mrf.mxu0
  %v1269 = vadd.f32 %v1037, %v1268
  %v1270 = vpop.f32.mrf.mxu0
  %v1271 = vadd.f32 %v1042, %v1270
  %1272 = vmatmul.bf16.gmra.mxu0 %v1196
  %v1273 = vpop.f32.mrf.mxu0
  %v1274 = vadd.f32 %v1047, %v1273
  %v1275 = vpop.f32.mrf.mxu0
  %v1276 = vadd.f32 %v1052, %v1275
  %1277 = vmatmul.bf16.gmra.mxu0 %v1200
  %v1278 = vpop.f32.mrf.mxu0
  %v1279 = vadd.f32 %v1057, %v1278
  %v1280 = vpop.f32.mrf.mxu0
  %v1281 = vadd.f32 %v1062, %v1280
  %1282 = vmatmul.bf16.gmra.mxu0 %v1204
  %v1283 = vpop.f32.mrf.mxu0
  %v1284 = vadd.f32 %v1067, %v1283
  %v1285 = vpop.f32.mrf.mxu0
  %v1286 = vadd.f32 %v1072, %v1285
  %1287 = vmatmul.bf16.gmra.mxu0 %v1208
  %v1288 = vpop.f32.mrf.mxu0
  %v1289 = vadd.f32 %v1077, %v1288
  %v1290 = vpop.f32.mrf.mxu0
  %v1291 = vadd.f32 %v1082, %v1290
  %1292 = vdwg.mxu0
  %1293 = vmatpush.bf16.msra.mxu0 %v971
  %1294 = vmatpush.bf16.msra.mxu0 %v970
  %1295 = vmatpush.bf16.msra.mxu0 %v969
  %1296 = vmatpush.bf16.msra.mxu0 %v968
  %1297 = vmatpush.bf16.msra.mxu0 %v967
  %1298 = vmatpush.bf16.msra.mxu0 %v966
  %1299 = vmatpush.bf16.msra.mxu0 %v965
  %1300 = vmatpush.bf16.msra.mxu0 %v964
  %1301 = vmatmul.bf16.gmra.mxu0 %v1181
  %v1302 = vpop.f32.mrf.mxu0
  %v1303 = vadd.f32 %v1254, %v1302
  %v1304 = vpop.f32.mrf.mxu0
  %v1305 = vadd.f32 %v1256, %v1304
  %1306 = vmatmul.bf16.gmra.mxu0 %v1185
  %v1307 = vpop.f32.mrf.mxu0
  %v1308 = vadd.f32 %v1259, %v1307
  %v1309 = vpop.f32.mrf.mxu0
  %v1310 = vadd.f32 %v1261, %v1309
  %1311 = vmatmul.bf16.gmra.mxu0 %v1189
  %v1312 = vpop.f32.mrf.mxu0
  %v1313 = vadd.f32 %v1264, %v1312
  %v1314 = vpop.f32.mrf.mxu0
  %v1315 = vadd.f32 %v1266, %v1314
  %1316 = vmatmul.bf16.gmra.mxu0 %v1193
  %v1317 = vpop.f32.mrf.mxu0
  %v1318 = vadd.f32 %v1269, %v1317
  %v1319 = vpop.f32.mrf.mxu0
  %v1320 = vadd.f32 %v1271, %v1319
  %1321 = vmatmul.bf16.gmra.mxu0 %v1197
  %v1322 = vpop.f32.mrf.mxu0
  %v1323 = vadd.f32 %v1274, %v1322
  %v1324 = vpop.f32.mrf.mxu0
  %v1325 = vadd.f32 %v1276, %v1324
  %1326 = vmatmul.bf16.gmra.mxu0 %v1201
  %v1327 = vpop.f32.mrf.mxu0
  %v1328 = vadd.f32 %v1279, %v1327
  %v1329 = vpop.f32.mrf.mxu0
  %v1330 = vadd.f32 %v1281, %v1329
  %1331 = vmatmul.bf16.gmra.mxu0 %v1205
  %v1332 = vpop.f32.mrf.mxu0
  %v1333 = vadd.f32 %v1284, %v1332
  %v1334 = vpop.f32.mrf.mxu0
  %v1335 = vadd.f32 %v1286, %v1334
  %1336 = vmatmul.bf16.gmra.mxu0 %v1209
  %v1337 = vpop.f32.mrf.mxu0
  %v1338 = vadd.f32 %v1289, %v1337
  %v1339 = vpop.f32.mrf.mxu0
  %v1340 = vadd.f32 %v1291, %v1339
  %1341 = vdwg.mxu0
  %1342 = vmatpush.bf16.msra.mxu0 %v979
  %1343 = vmatpush.bf16.msra.mxu0 %v978
  %1344 = vmatpush.bf16.msra.mxu0 %v977
  %1345 = vmatpush.bf16.msra.mxu0 %v976
  %1346 = vmatpush.bf16.msra.mxu0 %v975
  %1347 = vmatpush.bf16.msra.mxu0 %v974
  %1348 = vmatpush.bf16.msra.mxu0 %v973
  %1349 = vmatpush.bf16.msra.mxu0 %v972
  %1350 = vmatmul.bf16.gmra.mxu0 %v1182
  %v1351 = vpop.f32.mrf.mxu0
  %v1352 = vadd.f32 %v1303, %v1351
  %v1353 = vpop.f32.mrf.mxu0
  %v1354 = vadd.f32 %v1305, %v1353
  %1355 = vmatmul.bf16.gmra.mxu0 %v1186
  %v1356 = vpop.f32.mrf.mxu0
  %v1357 = vadd.f32 %v1308, %v1356
  %v1358 = vpop.f32.mrf.mxu0
  %v1359 = vadd.f32 %v1310, %v1358
  %1360 = vmatmul.bf16.gmra.mxu0 %v1190
  %v1361 = vpop.f32.mrf.mxu0
  %v1362 = vadd.f32 %v1313, %v1361
  %v1363 = vpop.f32.mrf.mxu0
  %v1364 = vadd.f32 %v1315, %v1363
  %1365 = vmatmul.bf16.gmra.mxu0 %v1194
  %v1366 = vpop.f32.mrf.mxu0
  %v1367 = vadd.f32 %v1318, %v1366
  %v1368 = vpop.f32.mrf.mxu0
  %v1369 = vadd.f32 %v1320, %v1368
  %1370 = vmatmul.bf16.gmra.mxu0 %v1198
  %v1371 = vpop.f32.mrf.mxu0
  %v1372 = vadd.f32 %v1323, %v1371
  %v1373 = vpop.f32.mrf.mxu0
  %v1374 = vadd.f32 %v1325, %v1373
  %1375 = vmatmul.bf16.gmra.mxu0 %v1202
  %v1376 = vpop.f32.mrf.mxu0
  %v1377 = vadd.f32 %v1328, %v1376
  %v1378 = vpop.f32.mrf.mxu0
  %v1379 = vadd.f32 %v1330, %v1378
  %1380 = vmatmul.bf16.gmra.mxu0 %v1206
  %v1381 = vpop.f32.mrf.mxu0
  %v1382 = vadd.f32 %v1333, %v1381
  %v1383 = vpop.f32.mrf.mxu0
  %v1384 = vadd.f32 %v1335, %v1383
  %1385 = vmatmul.bf16.gmra.mxu0 %v1210
  %v1386 = vpop.f32.mrf.mxu0
  %v1387 = vadd.f32 %v1338, %v1386
  %v1388 = vpop.f32.mrf.mxu0
  %v1389 = vadd.f32 %v1340, %v1388
  %1390 = vdwg.mxu0
  %1391 = vmatpush.bf16.msra.mxu0 %v987
  %1392 = vmatpush.bf16.msra.mxu0 %v986
  %1393 = vmatpush.bf16.msra.mxu0 %v985
  %1394 = vmatpush.bf16.msra.mxu0 %v984
  %1395 = vmatpush.bf16.msra.mxu0 %v983
  %1396 = vmatpush.bf16.msra.mxu0 %v982
  %1397 = vmatpush.bf16.msra.mxu0 %v981
  %1398 = vmatpush.bf16.msra.mxu0 %v980
  %1399 = vmatmul.bf16.gmra.mxu0 %v1183
  %v1400 = vpop.f32.mrf.mxu0
  %v1401 = vadd.f32 %v1352, %v1400
  %v1402 = vpop.f32.mrf.mxu0
  %v1403 = vadd.f32 %v1354, %v1402
  %1404 = vmatmul.bf16.gmra.mxu0 %v1187
  %v1405 = vpop.f32.mrf.mxu0
  %v1406 = vadd.f32 %v1357, %v1405
  %v1407 = vpop.f32.mrf.mxu0
  %v1408 = vadd.f32 %v1359, %v1407
  %1409 = vmatmul.bf16.gmra.mxu0 %v1191
  %v1410 = vpop.f32.mrf.mxu0
  %v1411 = vadd.f32 %v1362, %v1410
  %v1412 = vpop.f32.mrf.mxu0
  %v1413 = vadd.f32 %v1364, %v1412
  %1414 = vmatmul.bf16.gmra.mxu0 %v1195
  %v1415 = vpop.f32.mrf.mxu0
  %v1416 = vadd.f32 %v1367, %v1415
  %v1417 = vpop.f32.mrf.mxu0
  %v1418 = vadd.f32 %v1369, %v1417
  %1419 = vmatmul.bf16.gmra.mxu0 %v1199
  %v1420 = vpop.f32.mrf.mxu0
  %v1421 = vadd.f32 %v1372, %v1420
  %v1422 = vpop.f32.mrf.mxu0
  %v1423 = vadd.f32 %v1374, %v1422
  %1424 = vmatmul.bf16.gmra.mxu0 %v1203
  %v1425 = vpop.f32.mrf.mxu0
  %v1426 = vadd.f32 %v1377, %v1425
  %v1427 = vpop.f32.mrf.mxu0
  %v1428 = vadd.f32 %v1379, %v1427
  %1429 = vmatmul.bf16.gmra.mxu0 %v1207
  %v1430 = vpop.f32.mrf.mxu0
  %v1431 = vadd.f32 %v1382, %v1430
  %v1432 = vpop.f32.mrf.mxu0
  %v1433 = vadd.f32 %v1384, %v1432
  %1434 = vmatmul.bf16.gmra.mxu0 %v1211
  %v1435 = vpop.f32.mrf.mxu0
  %v1436 = vadd.f32 %v1387, %v1435
  %v1437 = vpop.f32.mrf.mxu0
  %v1438 = vadd.f32 %v1389, %v1437
  %1439 = vdwg.mxu0
  %v1440 = vmax.f32 %v1401, 0.0
  %v1441 = vmax.f32 %v1403, 0.0
  %v1442 = vmax.f32 %v1406, 0.0
  %v1443 = vmax.f32 %v1408, 0.0
  %v1444 = vmax.f32 %v1411, 0.0
  %v1445 = vmax.f32 %v1413, 0.0
  %v1446 = vmax.f32 %v1416, 0.0
  %v1447 = vmax.f32 %v1418, 0.0
  %v1448 = vmax.f32 %v1421, 0.0
  %v1449 = vmax.f32 %v1423, 0.0
  %v1450 = vmax.f32 %v1426, 0.0
  %v1451 = vmax.f32 %v1428, 0.0
  %v1452 = vmax.f32 %v1431, 0.0
  %v1453 = vmax.f32 %v1433, 0.0
  %v1454 = vmax.f32 %v1436, 0.0
  %v1455 = vmax.f32 %v1438, 0.0
  %v1456 = vld [vmem:[%s5] sm:$0xff]
  %v1457 = vld [vmem:[%s5 + $0x8] sm:$0xff]
  %v1458 = vld [vmem:[%s5 + $0x10] sm:$0xff]
  %v1459 = vld [vmem:[%s5 + $0x18] sm:$0xff]
  %v1460 = vld [vmem:[%s5 + $0x20] sm:$0xff]
  %v1461 = vld [vmem:[%s5 + $0x28] sm:$0xff]
  %v1462 = vld [vmem:[%s5 + $0x30] sm:$0xff]
  %v1463 = vld [vmem:[%s5 + $0x38] sm:$0xff]
  %v1464 = vld [vmem:[%s5 + $0x40] sm:$0xff]
  %v1465 = vld [vmem:[%s5 + $0x48] sm:$0xff]
  %v1466 = vld [vmem:[%s5 + $0x50] sm:$0xff]
  %v1467 = vld [vmem:[%s5 + $0x58] sm:$0xff]
  %v1468 = vld [vmem:[%s5 + $0x60] sm:$0xff]
  %v1469 = vld [vmem:[%s5 + $0x68] sm:$0xff]
  %v1470 = vld [vmem:[%s5 + $0x70] sm:$0xff]
  %v1471 = vld [vmem:[%s5 + $0x78] sm:$0xff]
  %1473 = vset.pattern.permute.xlu0 0
  %1474 = vperm.xlu0 %1473, %v1456
  %v1475 = vpop.permute.xlu0 %1474
  %1478 = vset.pattern.permute.xlu0 0
  %1479 = vperm.xlu0 %1478, %v1457
  %v1480 = vpop.permute.xlu0 %1479
  %1483 = vset.pattern.permute.xlu0 0
  %1484 = vperm.xlu0 %1483, %v1458
  %v1485 = vpop.permute.xlu0 %1484
  %1488 = vset.pattern.permute.xlu0 0
  %1489 = vperm.xlu0 %1488, %v1459
  %v1490 = vpop.permute.xlu0 %1489
  %1493 = vset.pattern.permute.xlu0 0
  %1494 = vperm.xlu0 %1493, %v1460
  %v1495 = vpop.permute.xlu0 %1494
  %1498 = vset.pattern.permute.xlu0 0
  %1499 = vperm.xlu0 %1498, %v1461
  %v1500 = vpop.permute.xlu0 %1499
  %1503 = vset.pattern.permute.xlu0 0
  %1504 = vperm.xlu0 %1503, %v1462
  %v1505 = vpop.permute.xlu0 %1504
  %1508 = vset.pattern.permute.xlu0 0
  %1509 = vperm.xlu0 %1508, %v1463
  %v1510 = vpop.permute.xlu0 %1509
  %1513 = vset.pattern.permute.xlu0 0
  %1514 = vperm.xlu0 %1513, %v1464
  %v1515 = vpop.permute.xlu0 %1514
  %1518 = vset.pattern.permute.xlu0 0
  %1519 = vperm.xlu0 %1518, %v1465
  %v1520 = vpop.permute.xlu0 %1519
  %1523 = vset.pattern.permute.xlu0 0
  %1524 = vperm.xlu0 %1523, %v1466
  %v1525 = vpop.permute.xlu0 %1524
  %1528 = vset.pattern.permute.xlu0 0
  %1529 = vperm.xlu0 %1528, %v1467
  %v1530 = vpop.permute.xlu0 %1529
  %1533 = vset.pattern.permute.xlu0 0
  %1534 = vperm.xlu0 %1533, %v1468
  %v1535 = vpop.permute.xlu0 %1534
  %1538 = vset.pattern.permute.xlu0 0
  %1539 = vperm.xlu0 %1538, %v1469
  %v1540 = vpop.permute.xlu0 %1539
  %1543 = vset.pattern.permute.xlu0 0
  %1544 = vperm.xlu0 %1543, %v1470
  %v1545 = vpop.permute.xlu0 %1544
  %1548 = vset.pattern.permute.xlu0 0
  %1549 = vperm.xlu0 %1548, %v1471
  %v1550 = vpop.permute.xlu0 %1549
  %v1552 = vmul.f32 %v1440, %v1475
  %v1553 = vmul.f32 %v1441, %v1480
  %v1554 = vmul.f32 %v1442, %v1485
  %v1555 = vmul.f32 %v1443, %v1490
  %v1556 = vmul.f32 %v1444, %v1495
  %v1557 = vmul.f32 %v1445, %v1500
  %v1558 = vmul.f32 %v1446, %v1505
  %v1559 = vmul.f32 %v1447, %v1510
  %v1560 = vmul.f32 %v1448, %v1515
  %v1561 = vmul.f32 %v1449, %v1520
  %v1562 = vmul.f32 %v1450, %v1525
  %v1563 = vmul.f32 %v1451, %v1530
  %v1564 = vmul.f32 %v1452, %v1535
  %v1565 = vmul.f32 %v1453, %v1540
  %v1566 = vmul.f32 %v1454, %v1545
  %v1567 = vmul.f32 %v1455, %v1550
  %v1568 = vadd.f32 %v1552, %v1553
  %v1569 = vadd.f32 %v1568, %v1554
  %v1570 = vadd.f32 %v1569, %v1555
  %v1571 = vadd.f32 %v1570, %v1556
  %v1572 = vadd.f32 %v1571, %v1557
  %v1573 = vadd.f32 %v1572, %v1558
  %v1574 = vadd.f32 %v1573, %v1559
  %v1575 = vadd.f32 %v1574, %v1560
  %v1576 = vadd.f32 %v1575, %v1561
  %v1577 = vadd.f32 %v1576, %v1562
  %v1578 = vadd.f32 %v1577, %v1563
  %v1579 = vadd.f32 %v1578, %v1564
  %v1580 = vadd.f32 %v1579, %v1565
  %v1581 = vadd.f32 %v1580, %v1566
  %v1582 = vadd.f32 %v1581, %v1567
  %v1583 = vrot.slane %v1582, 4
  %v1584 = vadd.f32 %v1582, %v1583
  %v1585 = vrot.slane %v1584, 2
  %v1586 = vadd.f32 %v1584, %v1585
  %v1587 = vrot.slane %v1586, 1
  %v1588 = vadd.f32 %v1586, %v1587
  %s1589 = sld [smem:[#allocation2]]
  %v1590 = vstv %s1589
  %v1591 = vadd.f32 %v1588, %v1590
  %1592 = vst [vmem:[%s7] sm:$0x1] %v1591
  // Predicated region
  $region30: #{domain_classifier_digits.1} parent=0 // pred_check
    _
  $region31: #{domain_classifier_digits.1} parent=0 // pred_check_branch
    %1594 = sbr.rel (0) target = $region33
  $region32: #{domain_classifier_digits.1} parent=0 // pred_region
    _
  $region33: #{domain_classifier_digits.1} parent=0 // pred_fallthru
    _
  // Predicated region
  $region34: #{domain_classifier_digits.1} parent=0 // pred_check
    _
  $region35: #{domain_classifier_digits.1} parent=0 // pred_check_branch
    %1596 = sbr.rel (0) target = $region37
  $region36: #{domain_classifier_digits.1} parent=0 // pred_region
    _
  $region37: #{domain_classifier_digits.1} parent=0 // pred_fallthru
    _

</llo_original>
